<compile_context>
chip_gen: v5e
topology: v5e:2x2
jax: 0.10.0
libtpu: 0.0.40
codegen_flags: <defaults>
</compile_context>

<pallas_src>
import functools

import jax
import jax.numpy as jnp
from jax.experimental import pallas as pl
from jax.experimental.pallas import tpu as pltpu


_MAX_TILE_N = 2048          # bounds (tile_n, 1) side-stream lane-padding in VMEM
_BLOCK_BYTES = 4 << 20      # target logits block size (~2-8 MiB pipeline sweet spot)


def _round_down(x, m):
    return (x // m) * m


def _choose_tiles(n, c, itemsize, block_bytes=_BLOCK_BYTES):
    """Pick (tile_n, tile_c) so the logits block is ~block_bytes and (8,128)-legal."""
    if 8 * c * itemsize <= block_bytes:
        # Full class axis fits comfortably: one reduction step per row tile.
        tile_c = c
        tile_n = max(64, _round_down(block_bytes // (c * itemsize), 64))
    else:
        # Vocab-scale class count: tile the class axis too (online-logsumexp path).
        tile_n = 128
        tile_c = max(128, _round_down(block_bytes // (tile_n * itemsize), 128))
    tile_n = min(tile_n, _MAX_TILE_N)
    if tile_n >= n:
        tile_n = n          # block == full array dim is always layout-legal
    if tile_c >= c:
        tile_c = c
    return tile_n, tile_c


def _soft_ce_kernel(*refs, c_total, tile_c, has_weights):
    if has_weights:
        logits_ref, targets_ref, weights_ref, out_ref, m_sc, l_sc, p_sc = refs
    else:
        logits_ref, targets_ref, out_ref, m_sc, l_sc, p_sc = refs
        weights_ref = None

    j = pl.program_id(1)

    @pl.when(j == 0)
    def _init():
        m_sc[...] = jnp.full_like(m_sc, -jnp.inf)
        l_sc[...] = jnp.zeros_like(l_sc)
        p_sc[...] = jnp.zeros_like(p_sc)

    x = logits_ref[...].astype(jnp.float32)            # (tile_n, tile_c)
    t = targets_ref[...]                               # (tile_n, 1) int32
    tn, tc = x.shape

    # Global class index of each column of this block.
    col = j * tile_c + jax.lax.broadcasted_iota(jnp.int32, (tn, tc), 1)

    # Target-logit pick fused into a masked sum (exactly one hit across all j).
    p_sc[...] += jnp.sum(jnp.where(col == t, x, 0.0), axis=-1, keepdims=True)

    # Online (flash-style) logsumexp over the class axis.
    if c_total % tile_c != 0:
        x_lse = jnp.where(col < c_total, x, -jnp.inf)  # mask padded tail columns
    else:
        x_lse = x
    m_prev = m_sc[...]
    m_new = jnp.maximum(m_prev, jnp.max(x_lse, axis=-1, keepdims=True))
    alpha = jnp.exp(m_prev - m_new)
    l_sc[...] = alpha * l_sc[...] + jnp.sum(jnp.exp(x_lse - m_new),
                                            axis=-1, keepdims=True)
    m_sc[...] = m_new

    @pl.when(j == pl.num_programs(1) - 1)
    def _finalize():
        lse = m_sc[...] + jnp.log(l_sc[...])
        loss = lse - p_sc[...]                         # per-sample cross entropy
        if has_weights:
            loss = loss * weights_ref[...].astype(jnp.float32)
        out_ref[...] = loss.astype(out_ref.dtype)


def soft_cross_entropy_loss(inputs, targets, weights=None, *,
                            tile_n=None, tile_c=None):
    """Pallas implementation of SoftCrossEntropyLoss.forward.

    inputs:  (N, C) float logits (float32 or bfloat16 -- bf16 is streamed as-is)
    targets: (N,)   int class indices in [0, C)
    weights: (N,)   optional per-sample weights
    returns: scalar float32 loss
    """
    # TODO(synk): F.cross_entropy's ignore_index=-100 semantics are not handled
    # (this module's forward never uses it); all targets must be valid class ids.
    n, c = inputs.shape
    itemsize = jnp.dtype(inputs.dtype).itemsize
    auto_tn, auto_tc = _choose_tiles(n, c, itemsize)
    tile_n = auto_tn if tile_n is None else tile_n
    tile_c = auto_tc if tile_c is None else tile_c

    n_tiles = pl.cdiv(n, tile_n)
    c_tiles = pl.cdiv(c, tile_c)

    targets2d = targets.astype(jnp.int32).reshape(n, 1)
    has_weights = weights is not None

    args = [inputs, targets2d]
    in_specs = [
        pl.BlockSpec((tile_n, tile_c), lambda i, j: (i, j)),
        pl.BlockSpec((tile_n, 1), lambda i, j: (i, 0)),
    ]
    if has_weights:
        args.append(weights.astype(jnp.float32).reshape(n, 1))
        in_specs.append(pl.BlockSpec((tile_n, 1), lambda i, j: (i, 0)))

    kernel = functools.partial(_soft_ce_kernel, c_total=c, tile_c=tile_c,
                               has_weights=has_weights)

    bytes_accessed = (n * c * itemsize                 # logits
                      + n * 4                          # targets
                      + (n * 4 if has_weights else 0)  # weights
                      + n * 4)                         # per-sample losses out
    cost = pl.CostEstimate(flops=5 * n * c,
                           transcendentals=n * c + n,
                           bytes_accessed=bytes_accessed)

    per_sample = pl.pallas_call(
        kernel,
        out_shape=jax.ShapeDtypeStruct((n, 1), jnp.float32),
        grid_spec=pltpu.PrefetchScalarGridSpec(
            num_scalar_prefetch=0,
            grid=(n_tiles, c_tiles),
            in_specs=in_specs,
            out_specs=pl.BlockSpec((tile_n, 1), lambda i, j: (i, 0)),
            scratch_shapes=[
                pltpu.VMEM((tile_n, 1), jnp.float32),   # running max  m
                pltpu.VMEM((tile_n, 1), jnp.float32),   # running sumexp l
                pltpu.VMEM((tile_n, 1), jnp.float32),   # picked target logit
            ],
        ),
        compiler_params=pltpu.CompilerParams(
            dimension_semantics=("parallel", "arbitrary"),
            vmem_limit_bytes=32 * 1024 * 1024,
        ),
        cost_estimate=cost,
    )(*args)

    # loss.mean() / (loss * weights).mean(): division is by N (matches the module).
    return jnp.mean(per_sample)


def _reference(inputs, targets, weights=None):
    # Pure-JAX reference identical to F.cross_entropy(..., reduction='none').
    x = inputs.astype(jnp.float32)
    lse = jax.nn.logsumexp(x, axis=-1)
    picked = jnp.take_along_axis(x, targets[:, None].astype(jnp.int32), axis=-1)[:, 0]
    loss = lse - picked
    if weights is None:
        return loss.mean()
    return (loss * weights.astype(jnp.float32)).mean()


if __name__ == "__main__":
    key = jax.random.PRNGKey(0)
    k1, k2, k3 = jax.random.split(key, 3)

    # Small shapes that still exercise partial tiles / the multi-tile grid:
    # 20 samples (not a multiple of 8), 200 classes (not a multiple of 128).
    N, C = 20, 200
    logits = jax.random.normal(k1, (N, C), dtype=jnp.float32)
    targets = jax.random.randint(k2, (N,), 0, C, dtype=jnp.int32)
    weights = jax.random.uniform(k3, (N,), dtype=jnp.float32)

    # 1) auto-tiled (single block here), no weights -> no-weights kernel variant
    out_plain = soft_cross_entropy_loss(logits, targets)
    jax.block_until_ready(out_plain)
    ref_plain = _reference(logits, targets)
    assert jnp.allclose(out_plain, ref_plain, atol=2e-5, rtol=2e-5), (out_plain, ref_plain)

    # 2) auto-tiled, weighted
    out_w = soft_cross_entropy_loss(logits, targets, weights)
    jax.block_until_ready(out_w)
    ref_w = _reference(logits, targets, weights)
    assert jnp.allclose(out_w, ref_w, atol=2e-5, rtol=2e-5), (out_w, ref_w)

    # 3) forced multi-tile grid: 3 row tiles (partial last) x 2 class tiles
    #    (partial last) -> exercises online logsumexp, column masking and
    #    out-of-bounds row dropping.
    out_tiled = soft_cross_entropy_loss(logits, targets, weights,
                                        tile_n=8, tile_c=128)
    jax.block_until_ready(out_tiled)
    assert jnp.allclose(out_tiled, ref_w, atol=2e-5, rtol=2e-5), (out_tiled, ref_w)

    # 4) bf16 logits streamed directly (f32 math inside the kernel)
    logits_bf16 = logits.astype(jnp.bfloat16)
    out_bf16 = soft_cross_entropy_loss(logits_bf16, targets)
    jax.block_until_ready(out_bf16)
    ref_bf16 = _reference(logits_bf16.astype(jnp.float32), targets)
    assert jnp.allclose(out_bf16, ref_bf16, atol=2e-5, rtol=2e-5), (out_bf16, ref_bf16)

    print("KERNEL_OK")
</pallas_src>

<mosaic_0001>
module attributes {stable_mosaic.version = 11 : i64} {
  func.func @_soft_ce_kernel(%arg0: i32, %arg1: i32, %arg2: memref<20x200xf32, #tpu.memory_space<vmem>>, %arg3: memref<20x1xi32, #tpu.memory_space<vmem>>, %arg4: memref<20x1xf32, #tpu.memory_space<vmem>>, %arg5: memref<20x1xf32, #tpu.memory_space<vmem>>, %arg6: memref<20x1xf32, #tpu.memory_space<vmem>>, %arg7: memref<20x1xf32, #tpu.memory_space<vmem>>) attributes {dimension_semantics = [#tpu.dimension_semantics<parallel>, #tpu.dimension_semantics<arbitrary>], iteration_bounds = array<i64: 1, 1>, scalar_prefetch = 0 : i64, scratch_operands = 3 : i64, tpu.core_type = #tpu.core_type<tc>, window_params = [{transform_indices = @transform_0, window_bounds = array<i64: 20, 200>}, {transform_indices = @transform_1, window_bounds = array<i64: 20, 1>}, {transform_indices = @transform_2, window_bounds = array<i64: 20, 1>}]} {
    %c0_i32 = arith.constant 0 : i32
    %0 = arith.cmpi eq, %arg1, %c0_i32 : i32
    %1 = arith.extui %0 : i1 to i32
    %c0_i32_0 = arith.constant 0 : i32
    %2 = arith.cmpi ne, %1, %c0_i32_0 : i32
    scf.if %2 {
      %cst_21 = arith.constant 0xFF800000 : f32
      %37 = vector.broadcast %cst_21 : f32 to vector<20x1xf32>
      %c0_22 = arith.constant 0 : index
      %c0_23 = arith.constant 0 : index
      %38 = vector.load %arg5[%c0_22, %c0_23] : memref<20x1xf32, #tpu.memory_space<vmem>>, vector<20x1xf32>
      tpu.vector_store %arg5[%c0_22, %c0_23], %37 {strides = array<i32>} : memref<20x1xf32, #tpu.memory_space<vmem>>, vector<20x1xf32>,
      %cst_24 = arith.constant 0.000000e+00 : f32
      %39 = vector.broadcast %cst_24 : f32 to vector<20x1xf32>
      %c0_25 = arith.constant 0 : index
      %c0_26 = arith.constant 0 : index
      %40 = vector.load %arg6[%c0_25, %c0_26] : memref<20x1xf32, #tpu.memory_space<vmem>>, vector<20x1xf32>
      tpu.vector_store %arg6[%c0_25, %c0_26], %39 {strides = array<i32>} : memref<20x1xf32, #tpu.memory_space<vmem>>, vector<20x1xf32>,
      %cst_27 = arith.constant 0.000000e+00 : f32
      %41 = vector.broadcast %cst_27 : f32 to vector<20x1xf32>
      %c0_28 = arith.constant 0 : index
      %c0_29 = arith.constant 0 : index
      %42 = vector.load %arg7[%c0_28, %c0_29] : memref<20x1xf32, #tpu.memory_space<vmem>>, vector<20x1xf32>
      tpu.vector_store %arg7[%c0_28, %c0_29], %41 {strides = array<i32>} : memref<20x1xf32, #tpu.memory_space<vmem>>, vector<20x1xf32>,
    } else {
    }
    %c0 = arith.constant 0 : index
    %c0_1 = arith.constant 0 : index
    %3 = vector.load %arg2[%c0, %c0_1] : memref<20x200xf32, #tpu.memory_space<vmem>>, vector<20x200xf32>
    %c0_2 = arith.constant 0 : index
    %c0_3 = arith.constant 0 : index
    %4 = vector.load %arg3[%c0_2, %c0_3] : memref<20x1xi32, #tpu.memory_space<vmem>>, vector<20x1xi32>
    %c200_i32 = arith.constant 200 : i32
    %5 = arith.muli %arg1, %c200_i32 : i32
    %6 = tpu.iota {dimensions = array<i32: 1>} : vector<20x200xi32>
    %7 = vector.broadcast %5 : i32 to vector<20x200xi32>
    %8 = arith.addi %7, %6 : vector<20x200xi32>
    %c0_4 = arith.constant 0 : index
    %c0_5 = arith.constant 0 : index
    %9 = vector.load %arg7[%c0_4, %c0_5] : memref<20x1xf32, #tpu.memory_space<vmem>>, vector<20x1xf32>
    %10 = vector.broadcast %4 : vector<20x1xi32> to vector<20x200xi32>
    %11 = arith.cmpi eq, %8, %10 : vector<20x200xi32>
    %cst = arith.constant 0.000000e+00 : f32
    %12 = vector.broadcast %cst : f32 to vector<20x200xf32>
    %13 = arith.select %11, %3, %12 : vector<20x200xi1>, vector<20x200xf32>
    %cst_6 = arith.constant dense<0.000000e+00> : vector<20xf32>
    %14 = vector.multi_reduction <add>, %13, %cst_6 [1] : vector<20x200xf32> to vector<20xf32>
    %15 = vector.shape_cast %14 : vector<20xf32> to vector<20x1xf32>
    %16 = arith.addf %9, %15 : vector<20x1xf32>
    %c0_7 = arith.constant 0 : index
    %c0_8 = arith.constant 0 : index
    %17 = vector.load %arg7[%c0_7, %c0_8] : memref<20x1xf32, #tpu.memory_space<vmem>>, vector<20x1xf32>
    tpu.vector_store %arg7[%c0_7, %c0_8], %16 {strides = array<i32>} : memref<20x1xf32, #tpu.memory_space<vmem>>, vector<20x1xf32>,
    %c0_9 = arith.constant 0 : index
    %c0_10 = arith.constant 0 : index
    %18 = vector.load %arg5[%c0_9, %c0_10] : memref<20x1xf32, #tpu.memory_space<vmem>>, vector<20x1xf32>
    %cst_11 = arith.constant dense<0xFF800000> : vector<20xf32>
    %19 = vector.multi_reduction <maximumf>, %3, %cst_11 [1] : vector<20x200xf32> to vector<20xf32>
    %20 = vector.shape_cast %19 : vector<20xf32> to vector<20x1xf32>
    %21 = arith.maximumf %18, %20 : vector<20x1xf32>
    %22 = arith.subf %18, %21 : vector<20x1xf32>
    %23 = math.exp %22 : vector<20x1xf32>
    %c0_12 = arith.constant 0 : index
    %c0_13 = arith.constant 0 : index
    %24 = vector.load %arg6[%c0_12, %c0_13] : memref<20x1xf32, #tpu.memory_space<vmem>>, vector<20x1xf32>
    %25 = arith.mulf %23, %24 : vector<20x1xf32>
    %26 = vector.broadcast %21 : vector<20x1xf32> to vector<20x200xf32>
    %27 = arith.subf %3, %26 : vector<20x200xf32>
    %28 = math.exp %27 : vector<20x200xf32>
    %cst_14 = arith.constant dense<0.000000e+00> : vector<20xf32>
    %29 = vector.multi_reduction <add>, %28, %cst_14 [1] : vector<20x200xf32> to vector<20xf32>
    %30 = vector.shape_cast %29 : vector<20xf32> to vector<20x1xf32>
    %31 = arith.addf %25, %30 : vector<20x1xf32>
    %c0_15 = arith.constant 0 : index
    %c0_16 = arith.constant 0 : index
    %32 = vector.load %arg6[%c0_15, %c0_16] : memref<20x1xf32, #tpu.memory_space<vmem>>, vector<20x1xf32>
    tpu.vector_store %arg6[%c0_15, %c0_16], %31 {strides = array<i32>} : memref<20x1xf32, #tpu.memory_space<vmem>>, vector<20x1xf32>,
    %c0_17 = arith.constant 0 : index
    %c0_18 = arith.constant 0 : index
    %33 = vector.load %arg5[%c0_17, %c0_18] : memref<20x1xf32, #tpu.memory_space<vmem>>, vector<20x1xf32>
    tpu.vector_store %arg5[%c0_17, %c0_18], %21 {strides = array<i32>} : memref<20x1xf32, #tpu.memory_space<vmem>>, vector<20x1xf32>,
    %c0_i32_19 = arith.constant 0 : i32
    %34 = arith.cmpi eq, %arg1, %c0_i32_19 : i32
    %35 = arith.extui %34 : i1 to i32
    %c0_i32_20 = arith.constant 0 : i32
    %36 = arith.cmpi ne, %35, %c0_i32_20 : i32
    scf.if %36 {
      %c0_21 = arith.constant 0 : index
      %c0_22 = arith.constant 0 : index
      %37 = vector.load %arg5[%c0_21, %c0_22] : memref<20x1xf32, #tpu.memory_space<vmem>>, vector<20x1xf32>
      %c0_23 = arith.constant 0 : index
      %c0_24 = arith.constant 0 : index
      %38 = vector.load %arg6[%c0_23, %c0_24] : memref<20x1xf32, #tpu.memory_space<vmem>>, vector<20x1xf32>
      %39 = math.log %38 : vector<20x1xf32>
      %40 = arith.addf %37, %39 : vector<20x1xf32>
      %c0_25 = arith.constant 0 : index
      %c0_26 = arith.constant 0 : index
      %41 = vector.load %arg7[%c0_25, %c0_26] : memref<20x1xf32, #tpu.memory_space<vmem>>, vector<20x1xf32>
      %42 = arith.subf %40, %41 : vector<20x1xf32>
      %c0_27 = arith.constant 0 : index
      %c0_28 = arith.constant 0 : index
      %43 = vector.load %arg4[%c0_27, %c0_28] : memref<20x1xf32, #tpu.memory_space<vmem>>, vector<20x1xf32>
      tpu.vector_store %arg4[%c0_27, %c0_28], %42 {strides = array<i32>} : memref<20x1xf32, #tpu.memory_space<vmem>>, vector<20x1xf32>,
    } else {
    }
    return
  }
  func.func @transform_0(%arg0: i32, %arg1: i32) -> (i32, i32) {
    %c0_i32 = arith.constant 0 : i32
    return %arg0, %arg1 : i32, i32
  }
  func.func @transform_1(%arg0: i32, %arg1: i32) -> (i32, i32) {
    %c0_i32 = arith.constant 0 : i32
    %c0_i32_0 = arith.constant 0 : i32
    return %arg0, %c0_i32 : i32, i32
  }
  func.func @transform_2(%arg0: i32, %arg1: i32) -> (i32, i32) {
    %c0_i32 = arith.constant 0 : i32
    %c0_i32_0 = arith.constant 0 : i32
    return %arg0, %c0_i32 : i32, i32
  }
}

</mosaic_0001>

<llo_original>
// kernel: tpu_custom_call.1
$region0: #{tpu_custom_call.1}
  #allocation0 [shape = 'u32[]', space=smem, size = 0x4, offset = 0x4, fixed_abs, tag = 'smem constant byte address 0x4 - core index']
  #allocation1 [shape = 'u32[72,128]{1,0:T(1,128)}', space=vmem, size = 0x9000, scoped, tag = 'internal scratch']
  #allocation2 [shape = 'f32[20,1]{1,0:T(8,128)}', space=vmem, size = 0x3000, scoped, tag = 'scratch operand']
  #allocation3 [shape = 'f32[20,1]{1,0:T(8,128)}', space=vmem, size = 0x3000, scoped, tag = 'scratch operand']
  #allocation4 [shape = 'f32[20,1]{1,0:T(8,128)}', space=vmem, size = 0x3000, scoped, tag = 'scratch operand']
  %s0 = inlined_call_operand.hbm [shape: f32[20,200], index: 0, kind: input, shape index: {}]
  %s1 = inlined_call_operand.vmem [shape: s32[20,1], index: 1, kind: input, shape index: {}]
  %s2 = inlined_call_operand.vmem [shape: f32[20,1], index: 2, kind: output, shape index: {}]
  %s3 = sld [smem:[#allocation0]]
  $region30: #{tpu_custom_call.1} parent=0
    _
  %s5 = ssub.s32 1, %s3
  %s6 = scalar_select 0, %s5, %s3
  $region1: #{tpu_custom_call.1} parent=0
    #allocation5 [shape = 'u8[24576]{0}', space=vmem, size = 0x6000, scoped, tag = 'input window, operand 0, single buffered']
    #allocation6 [shape = 's32[1]{0}', space=sflag, size = 0x4, scoped, tag = 'scoped memory for tpu_custom_call.1']
    %7 = vsyncpa [#allocation6], 0
    // Predicated region
    $region2: #{tpu_custom_call.1} parent=1 // pred_check
      _
    $region3: #{tpu_custom_call.1} parent=1 // pred_check_branch
      %9 = sbr.rel (0) target = $region5
    $region4: #{tpu_custom_call.1} parent=1 // pred_region
      %11 = vsyncadd [#allocation6], 0
      %s12 = sshll.u32 %s0, 4
      %s13 = int_to_ptr.hbm [resolvable:$true] %s12
      %s14 = sshll.u32 [#allocation5], 4
      %s15 = int_to_ptr.vmem [resolvable:$true] %s14
      %20 = dma.hbm_to_vmem [thread:$0]  %s13, 768, %s15, [#allocation6], 256, 256, 16
    $region5: #{tpu_custom_call.1} parent=1 // pred_fallthru
      _
    // Predicated region
    $region6: #{tpu_custom_call.1} parent=1 // pred_check
      _
    $region7: #{tpu_custom_call.1} parent=1 // pred_check_branch
      %22 = sbr.rel (0) target = $region9
    $region8: #{tpu_custom_call.1} parent=1 // pred_region
      _
    $region9: #{tpu_custom_call.1} parent=1 // pred_fallthru
      _
    // Predicated region
    $region10: #{tpu_custom_call.1} parent=1 // pred_check
      _
    $region11: #{tpu_custom_call.1} parent=1 // pred_check_branch
      %24 = sbr.rel (0) target = $region13
    $region12: #{tpu_custom_call.1} parent=1 // pred_region
      %26 = dma.done [#allocation6], 768
    $region13: #{tpu_custom_call.1} parent=1 // pred_fallthru
      _
    %p27 = scmp.eq.s32.totalorder 0, 0
    // Predicated region
    $region14: #{tpu_custom_call.1} parent=1 // pred_check
      %p28 = pneg %p27
    $region15: #{tpu_custom_call.1} parent=1 // pred_check_branch
      %30 = sbr.rel (%p28) target = $region17
    $region16: #{tpu_custom_call.1} parent=1 // pred_region
      %vm31 = vcmask 7168
      %32 = vst.msk [vmem:[#allocation2] sm:$0xff] %vm31, -inf
      %33 = vst.msk [vmem:[#allocation2 + $0x8] sm:$0xff] %vm31, -inf
      %vm34 = vcmask 3072
      %35 = vst.msk [vmem:[#allocation2 + $0x10] sm:$0xf] %vm34, -inf
      %36 = vst.msk [vmem:[#allocation3] sm:$0xff] %vm31, 0.0
      %37 = vst.msk [vmem:[#allocation3 + $0x8] sm:$0xff] %vm31, 0.0
      %38 = vst.msk [vmem:[#allocation3 + $0x10] sm:$0xf] %vm34, 0.0
      %39 = vst.msk [vmem:[#allocation4] sm:$0xff] %vm31, 0.0
      %40 = vst.msk [vmem:[#allocation4 + $0x8] sm:$0xff] %vm31, 0.0
      %41 = vst.msk [vmem:[#allocation4 + $0x10] sm:$0xf] %vm34, 0.0
    $region17: #{tpu_custom_call.1} parent=1 // pred_fallthru
      _
    %v42 = vld [vmem:[#allocation5] sm:$0xff]
    %v43 = vld [vmem:[#allocation5 + $0x8] sm:$0xff]
    %v44 = vld [vmem:[#allocation5 + $0x10] sm:$0xff]
    %v45 = vld [vmem:[#allocation5 + $0x18] sm:$0xff]
    %v46 = vld [vmem:[#allocation5 + $0x20] sm:$0xf]
    %v47 = vld [vmem:[#allocation5 + $0x28] sm:$0xf]
    %v48 = vld [vmem:[%s1] sm:$0xff]
    %v49 = vld [vmem:[%s1 + $0x8] sm:$0xff]
    %v50 = vld [vmem:[%s1 + $0x10] sm:$0xf]
    %s51 = smul.u32 0, 200
    %v52 = vlaneseq
    %v53 = vand.u32 %v52, 127
    %v54 = vadd.s32 %v53, 128
    %v55 = vstv %s51
    %v56 = vadd.s32 %v55, %v53
    %v57 = vadd.s32 %v55, %v54
    %v58 = vld [vmem:[#allocation4] sm:$0xff]
    %v59 = vld [vmem:[#allocation4 + $0x8] sm:$0xff]
    %v60 = vld [vmem:[#allocation4 + $0x10] sm:$0xf]
    %61 = vset.pattern.permute.xlu0 0
    %62 = vperm.xlu0 %61, %v48
    %v63 = vpop.permute.xlu0 %62
    %64 = vset.pattern.permute.xlu0 0
    %65 = vperm.xlu0 %64, %v49
    %v66 = vpop.permute.xlu0 %65
    %67 = vset.pattern.permute.xlu0 0
    %68 = vperm.xlu0 %67, %v50
    %v69 = vpop.permute.xlu0 %68
    %vm70 = vcmp.eq.s32.totalorder %v56, %v63
    %vm71 = vcmp.eq.s32.totalorder %v57, %v63
    %vm72 = vcmp.eq.s32.totalorder %v56, %v66
    %vm73 = vcmp.eq.s32.totalorder %v57, %v66
    %vm74 = vcmp.eq.s32.totalorder %v56, %v69
    %vm75 = vcmp.eq.s32.totalorder %v57, %v69
    %v76 = vsel %vm70, %v42, 0.0
    %v77 = vsel %vm71, %v43, 0.0
    %v78 = vsel %vm72, %v44, 0.0
    %v79 = vsel %vm73, %v45, 0.0
    %v80 = vsel %vm74, %v46, 0.0
    %v81 = vsel %vm75, %v47, 0.0
    %vm82 = vcmask 588800
    %v83 = vsel %vm82, %v77, 0.0
    %v84 = vadd.f32 %v76, %v83
    %85 = vadd.xlane.f32.xlu0 %v84
    %v86 = vpop.xlane.xlu0 %85
    %v87 = vsel %vm82, %v79, 0.0
    %v88 = vadd.f32 %v78, %v87
    %89 = vadd.xlane.f32.xlu0 %v88
    %v90 = vpop.xlane.xlu0 %89
    %vm91 = vcmask 1043456
    %v92 = vsel %vm91, %v80, 0.0
    %vm93 = vcmask 584704
    %v94 = vsel %vm93, %v81, 0.0
    %v95 = vadd.f32 %v92, %v94
    %96 = vadd.xlane.f32.xlu0 %v95
    %v97 = vpop.xlane.xlu0 %96
    %v98 = vadd.f32 %v58, %v86
    %v99 = vadd.f32 %v59, %v90
    %v100 = vadd.f32 %v60, %v97
    %vm101 = vcmask 7168
    %102 = vst.msk [vmem:[#allocation4] sm:$0xff] %vm101, %v98
    %103 = vst.msk [vmem:[#allocation4 + $0x8] sm:$0xff] %vm101, %v99
    %vm104 = vcmask 3072
    %105 = vst.msk [vmem:[#allocation4 + $0x10] sm:$0xf] %vm104, %v100
    %v106 = vld [vmem:[#allocation2] sm:$0xff]
    %v107 = vld [vmem:[#allocation2 + $0x8] sm:$0xff]
    %v108 = vld [vmem:[#allocation2 + $0x10] sm:$0xf]
    %v109 = vsel %vm82, %v43, -inf
    %v110 = vmax.f32 %v42, %v109
    %111 = vmax.xlane.f32.xlu0 %v110
    %v112 = vpop.xlane.xlu0 %111
    %v113 = vsel %vm82, %v45, -inf
    %v114 = vmax.f32 %v44, %v113
    %115 = vmax.xlane.f32.xlu0 %v114
    %v116 = vpop.xlane.xlu0 %115
    %v117 = vsel %vm91, %v46, -inf
    %v118 = vsel %vm93, %v47, -inf
    %v119 = vmax.f32 %v117, %v118
    %120 = vmax.xlane.f32.xlu0 %v119
    %v121 = vpop.xlane.xlu0 %120
    %v122 = vmax.f32 %v106, %v112
    %v123 = vmax.f32 %v107, %v116
    %v124 = vmax.f32 %v108, %v121
    %v125 = vsub.f32 %v106, %v122
    %v126 = vsub.f32 %v107, %v123
    %v127 = vsub.f32 %v108, %v124
    %v128 = vmul.f32 %v125, 1.442695
    %v129 = vpow.pop %v128
    %v130 = vmul.f32 %v126, 1.442695
    %v131 = vpow.pop %v130
    %v132 = vmul.f32 %v127, 1.442695
    %v133 = vpow.pop %v132
    %v134 = vld [vmem:[#allocation3] sm:$0xff]
    %v135 = vld [vmem:[#allocation3 + $0x8] sm:$0xff]
    %v136 = vld [vmem:[#allocation3 + $0x10] sm:$0xf]
    %v137 = vmul.f32 %v129, %v134
    %v138 = vmul.f32 %v131, %v135
    %v139 = vmul.f32 %v133, %v136
    %141 = vset.pattern.permute.xlu0 0
    %142 = vperm.xlu0 %141, %v122
    %v143 = vpop.permute.xlu0 %142
    %146 = vset.pattern.permute.xlu0 0
    %147 = vperm.xlu0 %146, %v123
    %v148 = vpop.permute.xlu0 %147
    %151 = vset.pattern.permute.xlu0 0
    %152 = vperm.xlu0 %151, %v124
    %v153 = vpop.permute.xlu0 %152
    %v155 = vsub.f32 %v42, %v143
    %v156 = vsub.f32 %v43, %v143
    %v157 = vsub.f32 %v44, %v148
    %v158 = vsub.f32 %v45, %v148
    %v159 = vsub.f32 %v46, %v153
    %v160 = vsub.f32 %v47, %v153
    %v161 = vmul.f32 %v155, 1.442695
    %v162 = vpow.pop %v161
    %v163 = vmul.f32 %v156, 1.442695
    %v164 = vpow.pop %v163
    %v165 = vmul.f32 %v157, 1.442695
    %v166 = vpow.pop %v165
    %v167 = vmul.f32 %v158, 1.442695
    %v168 = vpow.pop %v167
    %v169 = vmul.f32 %v159, 1.442695
    %v170 = vpow.pop %v169
    %v171 = vmul.f32 %v160, 1.442695
    %v172 = vpow.pop %v171
    %v173 = vsel %vm82, %v164, 0.0
    %v174 = vadd.f32 %v162, %v173
    %175 = vadd.xlane.f32.xlu0 %v174
    %v176 = vpop.xlane.xlu0 %175
    %v177 = vsel %vm82, %v168, 0.0
    %v178 = vadd.f32 %v166, %v177
    %179 = vadd.xlane.f32.xlu0 %v178
    %v180 = vpop.xlane.xlu0 %179
    %v181 = vsel %vm91, %v170, 0.0
    %v182 = vsel %vm93, %v172, 0.0
    %v183 = vadd.f32 %v181, %v182
    %184 = vadd.xlane.f32.xlu0 %v183
    %v185 = vpop.xlane.xlu0 %184
    %v186 = vadd.f32 %v137, %v176
    %v187 = vadd.f32 %v138, %v180
    %v188 = vadd.f32 %v139, %v185
    %189 = vst.msk [vmem:[#allocation3] sm:$0xff] %vm101, %v186
    %190 = vst.msk [vmem:[#allocation3 + $0x8] sm:$0xff] %vm101, %v187
    %191 = vst.msk [vmem:[#allocation3 + $0x10] sm:$0xf] %vm104, %v188
    %192 = vst.msk [vmem:[#allocation2] sm:$0xff] %vm101, %v122
    %193 = vst.msk [vmem:[#allocation2 + $0x8] sm:$0xff] %vm101, %v123
    %194 = vst.msk [vmem:[#allocation2 + $0x10] sm:$0xf] %vm104, %v124
    // Predicated region
    $region18: #{tpu_custom_call.1} parent=1 // pred_check
      %p195 = pneg %p27
    $region19: #{tpu_custom_call.1} parent=1 // pred_check_branch
      %197 = sbr.rel (%p195) target = $region21
    $region20: #{tpu_custom_call.1} parent=1 // pred_region
      %v198 = vld [vmem:[#allocation2] sm:$0xff]
      %v199 = vld [vmem:[#allocation2 + $0x8] sm:$0xff]
      %v200 = vld [vmem:[#allocation2 + $0x10] sm:$0xf]
      %v201 = vld [vmem:[#allocation3] sm:$0xff]
      %v202 = vld [vmem:[#allocation3 + $0x8] sm:$0xff]
      %v203 = vld [vmem:[#allocation3 + $0x10] sm:$0xf]
      %v204 = vlog2.pop %v201
      %v205 = vmul.f32 %v204, 0.6931472
      %v206 = vlog2.pop %v202
      %v207 = vmul.f32 %v206, 0.6931472
      %v208 = vlog2.pop %v203
      %v209 = vmul.f32 %v208, 0.6931472
      %v210 = vadd.f32 %v198, %v205
      %v211 = vadd.f32 %v199, %v207
      %v212 = vadd.f32 %v200, %v209
      %v213 = vld [vmem:[#allocation4] sm:$0xff]
      %v214 = vld [vmem:[#allocation4 + $0x8] sm:$0xff]
      %v215 = vld [vmem:[#allocation4 + $0x10] sm:$0xf]
      %v216 = vsub.f32 %v210, %v213
      %v217 = vsub.f32 %v211, %v214
      %v218 = vsub.f32 %v212, %v215
      %219 = vst.msk [vmem:[%s2] sm:$0xff] %vm101, %v216
      %220 = vst.msk [vmem:[%s2 + $0x8] sm:$0xff] %vm101, %v217
      %221 = vst.msk [vmem:[%s2 + $0x10] sm:$0xf] %vm104, %v218
    $region21: #{tpu_custom_call.1} parent=1 // pred_fallthru
      _
    // Predicated region
    $region22: #{tpu_custom_call.1} parent=1 // pred_check
      _
    $region23: #{tpu_custom_call.1} parent=1 // pred_check_branch
      %223 = sbr.rel (0) target = $region25
    $region24: #{tpu_custom_call.1} parent=1 // pred_region
      _
    $region25: #{tpu_custom_call.1} parent=1 // pred_fallthru
      _
    // Predicated region
    $region26: #{tpu_custom_call.1} parent=1 // pred_check
      _
    $region27: #{tpu_custom_call.1} parent=1 // pred_check_branch
      %225 = sbr.rel (0) target = $region29
    $region28: #{tpu_custom_call.1} parent=1 // pred_region
      _
    $region29: #{tpu_custom_call.1} parent=1 // pred_fallthru
      _
    %226 = vsyncpa [#allocation6], 1

</llo_original>
